<compile_context>
chip_gen: v6e
topology: v6e:2x2x1
jax: 0.10.0
libtpu: 0.0.40
codegen_flags: <defaults>
</compile_context>

<pallas_src>
import jax
import jax.numpy as jnp
from jax.experimental import pallas as pl
from jax.experimental.pallas import tpu as pltpu

_LANES = 128
_MAX_ROWS_PER_BLOCK = 1024  # 128K f32 elements (= 32K problems) per grid step


def _round_up(x, m):
    return ((x + m - 1) // m) * m


def xt_kernel(hic_ref, t1_ref, t2_ref, v1_ref, v2_ref, o_ref):
    """All vector refs are (TR, 128) f32, flat element order e = 4*b + k.

    out[e] = 0.5*t1[e^2] - hic*v1[e^2] + 0.5*t2[e] - hic*v2[e]
    (the e -> e^2 swap stays inside each group of 4 lanes, hence inside each
    128-lane row, so it is a pure lane permutation).
    """
    hic = hic_ref[0]                               # 0.5 / c (SMEM scalar)
    s1 = 0.5 * t1_ref[...] - hic * v1_ref[...]     # needs the lane permutation
    s2 = 0.5 * t2_ref[...] - hic * v2_ref[...]

    # Lane permutation j -> j ^ 2 (swap adjacent pairs within each group of 4).
    # Combine roll(+2) and roll(-2) with a mask derived from the same roll
    # applied to the lane iota, so correctness is independent of the roll
    # direction convention.  XLU work only; hidden under the HBM-bound DMA.
    lane = jax.lax.broadcasted_iota(jnp.int32, s1.shape, 1)
    lane_f = lane.astype(jnp.float32)
    target_f = jnp.bitwise_xor(lane, 2).astype(jnp.float32)
    take_a = pltpu.roll(lane_f, shift=2, axis=1) == target_f
    s1_perm = jnp.where(take_a,
                        pltpu.roll(s1, shift=2, axis=1),
                        pltpu.roll(s1, shift=_LANES - 2, axis=1))
    o_ref[...] = s1_perm + s2


def _xt_core(t1, t2, v1, v2, c):
    """t1, t2, v1, v2: any shape holding B*4 elements (b-major, k-minor).

    Returns (B, 4) float32 with row b = E @ u_b.
    """
    n = t1.size
    b = n // 4

    # Lane-dense tiling: flat stream -> (rows, 128); (TR, 128) blocks.
    rows = _round_up(max(1, -(-n // _LANES)), 8)
    if rows > _MAX_ROWS_PER_BLOCK:
        tr = _MAX_ROWS_PER_BLOCK
    elif rows >= 16 and rows % 16 == 0:
        tr = rows // 2          # >=2 grid steps -> v7x megacore sharding
    else:
        tr = rows
    rows_pad = _round_up(rows, tr)
    n_pad = rows_pad * _LANES

    def prep(a):
        a = a.reshape(-1).astype(jnp.float32)      # free row-major flatten
        if n_pad != n:                             # pad only when needed
            a = jnp.pad(a, (0, n_pad - n))
        return a.reshape(rows_pad, _LANES)         # free row-major reshape

    hic = jnp.reshape(0.5 / jnp.asarray(c, jnp.float32), (1,))
    block = pl.BlockSpec((tr, _LANES), lambda i: (i, 0))

    out = pl.pallas_call(
        xt_kernel,
        out_shape=jax.ShapeDtypeStruct((rows_pad, _LANES), jnp.float32),
        grid=(rows_pad // tr,),
        in_specs=[
            pl.BlockSpec(memory_space=pltpu.MemorySpace.SMEM),   # hic (1,)
            block, block, block, block,
        ],
        out_specs=block,
        compiler_params=pltpu.CompilerParams(
            dimension_semantics=("parallel",)),
    )(hic, prep(t1), prep(t2), prep(v1), prep(v2))

    return out.reshape(-1)[:n].reshape(b, 4)


@jax.jit
def xt_layer_batched(t1, t2, v1, v2, c):
    """B independent Xt_Layer problems in one pallas_call.

    t1, t2, v1, v2: (B, 4, 1); c: scalar shared across the batch.
    Returns (B, 4, 1) float32.
    """
    b = t1.shape[0]
    return _xt_core(t1, t2, v1, v2, c).reshape(b, 4, 1)


@jax.jit
def xt_layer(t1, t2, v1, v2, c):
    """Single problem, same signature/semantics as the PyTorch module.

    t1, t2, v1, v2: (4, 1); c: scalar. Returns (4, 1) float32.
    A single 64-FLOP problem is launch-overhead bound, so this path is plain
    jnp (XLA fuses it); use xt_layer_batched for the Pallas kernel.
    """
    perm = jnp.array([2, 3, 0, 1], dtype=jnp.int32)
    cf = jnp.asarray(c, jnp.float32)
    u1 = t1.reshape(4).astype(jnp.float32) - v1.reshape(4).astype(jnp.float32) / cf
    u2 = t2.reshape(4).astype(jnp.float32) - v2.reshape(4).astype(jnp.float32) / cf
    return (0.5 * (u1[perm] + u2)).reshape(4, 1)


if __name__ == "__main__":
    E = jnp.array(
        [[0.0, 0.0, 0.5, 0.0, 0.5, 0.0, 0.0, 0.0],
         [0.0, 0.0, 0.0, 0.5, 0.0, 0.5, 0.0, 0.0],
         [0.5, 0.0, 0.0, 0.0, 0.0, 0.0, 0.5, 0.0],
         [0.0, 0.5, 0.0, 0.0, 0.0, 0.0, 0.0, 0.5]],
        dtype=jnp.float32)

    key = jax.random.PRNGKey(0)
    c = 2.0

    # --- Batched Pallas kernel: B independent problems, one pallas_call. ---
    B = 64
    k1, k2, k3, k4, key = jax.random.split(key, 5)
    bt1 = jax.random.normal(k1, (B, 4, 1), dtype=jnp.float32)
    bt2 = jax.random.normal(k2, (B, 4, 1), dtype=jnp.float32)
    bv1 = jax.random.normal(k3, (B, 4, 1), dtype=jnp.float32)
    bv2 = jax.random.normal(k4, (B, 4, 1), dtype=jnp.float32)
    bout = jax.block_until_ready(xt_layer_batched(bt1, bt2, bv1, bv2, c))
    bu = (jnp.concatenate([bt1, bt2], axis=1)
          - (1.0 / c) * jnp.concatenate([bv1, bv2], axis=1))
    bref = jnp.einsum("ij,bjk->bik", E, bu)
    assert bout.shape == (B, 4, 1)
    assert jnp.allclose(bout, bref, atol=1e-5, rtol=1e-5)

    # --- Ragged batch (exercises padding + the 2-step "parallel" grid). ---
    B2 = 1000
    k1, k2, k3, k4, key = jax.random.split(key, 5)
    rt1 = jax.random.normal(k1, (B2, 4, 1), dtype=jnp.float32)
    rt2 = jax.random.normal(k2, (B2, 4, 1), dtype=jnp.float32)
    rv1 = jax.random.normal(k3, (B2, 4, 1), dtype=jnp.float32)
    rv2 = jax.random.normal(k4, (B2, 4, 1), dtype=jnp.float32)
    rout = jax.block_until_ready(xt_layer_batched(rt1, rt2, rv1, rv2, c))
    ru = (jnp.concatenate([rt1, rt2], axis=1)
          - (1.0 / c) * jnp.concatenate([rv1, rv2], axis=1))
    rref = jnp.einsum("ij,bjk->bik", E, ru)
    assert rout.shape == (B2, 4, 1)
    assert jnp.allclose(rout, rref, atol=1e-5, rtol=1e-5)

    # --- Single problem (module signature): plain jnp, no Pallas launch. ---
    k1, k2, k3, k4, key = jax.random.split(key, 5)
    t1 = jax.random.normal(k1, (4, 1), dtype=jnp.float32)
    t2 = jax.random.normal(k2, (4, 1), dtype=jnp.float32)
    v1 = jax.random.normal(k3, (4, 1), dtype=jnp.float32)
    v2 = jax.random.normal(k4, (4, 1), dtype=jnp.float32)
    out = jax.block_until_ready(xt_layer(t1, t2, v1, v2, c))
    ref = E @ (jnp.concatenate([t1, t2], axis=0)
               - (1.0 / c) * jnp.concatenate([v1, v2], axis=0))
    assert out.shape == (4, 1)
    assert jnp.allclose(out, ref, atol=1e-5, rtol=1e-5)

    # TODO(synk): for real ADMM use, fuse the full unrolled iteration (Xt + rho
    # updates) into one kernel body so the per-call overhead is paid once.
    print("KERNEL_OK")
</pallas_src>

<mosaic_0001>
module attributes {stable_mosaic.version = 11 : i64} {
  func.func @xt_kernel(%arg0: i32, %arg1: memref<1xf32, #tpu.memory_space<smem>>, %arg2: memref<8x128xf32, #tpu.memory_space<vmem>>, %arg3: memref<8x128xf32, #tpu.memory_space<vmem>>, %arg4: memref<8x128xf32, #tpu.memory_space<vmem>>, %arg5: memref<8x128xf32, #tpu.memory_space<vmem>>, %arg6: memref<8x128xf32, #tpu.memory_space<vmem>>) attributes {dimension_semantics = [#tpu.dimension_semantics<parallel>], iteration_bounds = array<i64: 1>, scalar_prefetch = 0 : i64, scratch_operands = 0 : i64, tpu.core_type = #tpu.core_type<tc>, window_params = [{transform_indices = @transform_0, window_bounds = array<i64: 1>}, {transform_indices = @transform_1, window_bounds = array<i64: 8, 128>}, {transform_indices = @transform_2, window_bounds = array<i64: 8, 128>}, {transform_indices = @transform_3, window_bounds = array<i64: 8, 128>}, {transform_indices = @transform_4, window_bounds = array<i64: 8, 128>}, {transform_indices = @transform_5, window_bounds = array<i64: 8, 128>}]} {
    %c0 = arith.constant 0 : index
    %0 = memref.load %arg1[%c0] : memref<1xf32, #tpu.memory_space<smem>>
    %c0_0 = arith.constant 0 : index
    %c0_1 = arith.constant 0 : index
    %1 = vector.load %arg2[%c0_0, %c0_1] : memref<8x128xf32, #tpu.memory_space<vmem>>, vector<8x128xf32>
    %cst = arith.constant 5.000000e-01 : f32
    %2 = vector.broadcast %cst : f32 to vector<8x128xf32>
    %3 = arith.mulf %2, %1 : vector<8x128xf32>
    %c0_2 = arith.constant 0 : index
    %c0_3 = arith.constant 0 : index
    %4 = vector.load %arg4[%c0_2, %c0_3] : memref<8x128xf32, #tpu.memory_space<vmem>>, vector<8x128xf32>
    %5 = vector.broadcast %0 : f32 to vector<8x128xf32>
    %6 = arith.mulf %5, %4 : vector<8x128xf32>
    %7 = arith.subf %3, %6 : vector<8x128xf32>
    %c0_4 = arith.constant 0 : index
    %c0_5 = arith.constant 0 : index
    %8 = vector.load %arg3[%c0_4, %c0_5] : memref<8x128xf32, #tpu.memory_space<vmem>>, vector<8x128xf32>
    %cst_6 = arith.constant 5.000000e-01 : f32
    %9 = vector.broadcast %cst_6 : f32 to vector<8x128xf32>
    %10 = arith.mulf %9, %8 : vector<8x128xf32>
    %c0_7 = arith.constant 0 : index
    %c0_8 = arith.constant 0 : index
    %11 = vector.load %arg5[%c0_7, %c0_8] : memref<8x128xf32, #tpu.memory_space<vmem>>, vector<8x128xf32>
    %12 = vector.broadcast %0 : f32 to vector<8x128xf32>
    %13 = arith.mulf %12, %11 : vector<8x128xf32>
    %14 = arith.subf %10, %13 : vector<8x128xf32>
    %15 = tpu.iota {dimensions = array<i32: 1>} : vector<8x128xi32>
    %16 = arith.sitofp %15 : vector<8x128xi32> to vector<8x128xf32>
    %c2_i32 = arith.constant 2 : i32
    %17 = vector.broadcast %c2_i32 : i32 to vector<8x128xi32>
    %18 = arith.xori %15, %17 : vector<8x128xi32>
    %19 = arith.sitofp %18 : vector<8x128xi32> to vector<8x128xf32>
    %c2_i32_9 = arith.constant 2 : i32
    %20 = tpu.dynamic_rotate %16 by %c2_i32_9 dim 1 : vector<8x128xf32>, i32 -> vector<8x128xf32>
    %21 = arith.cmpf oeq, %20, %19 : vector<8x128xf32>
    %c2_i32_10 = arith.constant 2 : i32
    %22 = tpu.dynamic_rotate %7 by %c2_i32_10 dim 1 : vector<8x128xf32>, i32 -> vector<8x128xf32>
    %c126_i32 = arith.constant 126 : i32
    %23 = tpu.dynamic_rotate %7 by %c126_i32 dim 1 : vector<8x128xf32>, i32 -> vector<8x128xf32>
    %24 = arith.select %21, %22, %23 : vector<8x128xi1>, vector<8x128xf32>
    %25 = arith.addf %24, %14 : vector<8x128xf32>
    %c0_11 = arith.constant 0 : index
    %c0_12 = arith.constant 0 : index
    %26 = vector.load %arg6[%c0_11, %c0_12] : memref<8x128xf32, #tpu.memory_space<vmem>>, vector<8x128xf32>
    tpu.vector_store %arg6[%c0_11, %c0_12], %25 {strides = array<i32>} : memref<8x128xf32, #tpu.memory_space<vmem>>, vector<8x128xf32>,
    return
  }
  func.func @transform_0(%arg0: i32) -> i32 {
    %c0_i32 = arith.constant 0 : i32
    %c0_i32_0 = arith.constant 0 : i32
    return %c0_i32 : i32
  }
  func.func @transform_1(%arg0: i32) -> (i32, i32) {
    %c0_i32 = arith.constant 0 : i32
    %c0_i32_0 = arith.constant 0 : i32
    return %arg0, %c0_i32 : i32, i32
  }
  func.func @transform_2(%arg0: i32) -> (i32, i32) {
    %c0_i32 = arith.constant 0 : i32
    %c0_i32_0 = arith.constant 0 : i32
    return %arg0, %c0_i32 : i32, i32
  }
  func.func @transform_3(%arg0: i32) -> (i32, i32) {
    %c0_i32 = arith.constant 0 : i32
    %c0_i32_0 = arith.constant 0 : i32
    return %arg0, %c0_i32 : i32, i32
  }
  func.func @transform_4(%arg0: i32) -> (i32, i32) {
    %c0_i32 = arith.constant 0 : i32
    %c0_i32_0 = arith.constant 0 : i32
    return %arg0, %c0_i32 : i32, i32
  }
  func.func @transform_5(%arg0: i32) -> (i32, i32) {
    %c0_i32 = arith.constant 0 : i32
    %c0_i32_0 = arith.constant 0 : i32
    return %arg0, %c0_i32 : i32, i32
  }
}

</mosaic_0001>

<llo_original>
// kernel: xt_layer_batched.1
$region0: #{xt_layer_batched.1}
  #allocation0 [shape = 'u32[]', space=smem, size = 0x4, offset = 0x4, fixed_abs, tag = 'smem constant byte address 0x4 - core index']
  #allocation1 [shape = 'u32[144,128]{1,0:T(1,128)}', space=vmem, size = 0x12000, scoped, tag = 'internal scratch']
  #allocation2 [shape = 'f32[1]{0:T(128)S(6)}', space=smem, size = 0x200, scoped, tag = 'scoped memory for xt_layer_batched.1']
  %s0 = inlined_call_operand.<no memory space> [shape: f32[1], index: 0, kind: input, shape index: {}]
  %s1 = inlined_call_operand.vmem [shape: f32[8,128], index: 1, kind: input, shape index: {}]
  %s2 = inlined_call_operand.vmem [shape: f32[8,128], index: 2, kind: input, shape index: {}]
  %s3 = inlined_call_operand.vmem [shape: f32[8,128], index: 3, kind: input, shape index: {}]
  %s4 = inlined_call_operand.vmem [shape: f32[8,128], index: 4, kind: input, shape index: {}]
  %s5 = inlined_call_operand.vmem [shape: f32[8,128], index: 5, kind: output, shape index: {}]
  %s6 = sld [smem:[#allocation0]]
  $region30: #{xt_layer_batched.1} parent=0
    _
  %s8 = ssub.s32 1, %s6
  %s9 = scalar_select 0, %s8, %s6
  %10 = sst [smem:[#allocation2]] %s0
  // Predicated region
  $region2: #{xt_layer_batched.1} parent=0 // pred_check
    _
  $region3: #{xt_layer_batched.1} parent=0 // pred_check_branch
    %12 = sbr.rel (0) target = $region5
  $region4: #{xt_layer_batched.1} parent=0 // pred_region
    _
  $region5: #{xt_layer_batched.1} parent=0 // pred_fallthru
    _
  // Predicated region
  $region6: #{xt_layer_batched.1} parent=0 // pred_check
    _
  $region7: #{xt_layer_batched.1} parent=0 // pred_check_branch
    %14 = sbr.rel (0) target = $region9
  $region8: #{xt_layer_batched.1} parent=0 // pred_region
    _
  $region9: #{xt_layer_batched.1} parent=0 // pred_fallthru
    _
  // Predicated region
  $region10: #{xt_layer_batched.1} parent=0 // pred_check
    _
  $region11: #{xt_layer_batched.1} parent=0 // pred_check_branch
    %16 = sbr.rel (0) target = $region13
  $region12: #{xt_layer_batched.1} parent=0 // pred_region
    _
  $region13: #{xt_layer_batched.1} parent=0 // pred_fallthru
    _
  // Predicated region
  $region14: #{xt_layer_batched.1} parent=0 // pred_check
    _
  $region15: #{xt_layer_batched.1} parent=0 // pred_check_branch
    %18 = sbr.rel (0) target = $region17
  $region16: #{xt_layer_batched.1} parent=0 // pred_region
    _
  $region17: #{xt_layer_batched.1} parent=0 // pred_fallthru
    _
  // Predicated region
  $region18: #{xt_layer_batched.1} parent=0 // pred_check
    _
  $region19: #{xt_layer_batched.1} parent=0 // pred_check_branch
    %20 = sbr.rel (0) target = $region21
  $region20: #{xt_layer_batched.1} parent=0 // pred_region
    _
  $region21: #{xt_layer_batched.1} parent=0 // pred_fallthru
    _
  %s21 = sld [smem:[#allocation2]]
  %v22 = vld [vmem:[%s1] sm:$0xff]
  %v23 = vmul.f32 %v22, 0.5
  %v24 = vld [vmem:[%s3] sm:$0xff]
  %v25 = vstv %s21
  %v26 = vmul.f32 %v25, %v24
  %v27 = vsub.f32 %v23, %v26
  %v28 = vld [vmem:[%s2] sm:$0xff]
  %v29 = vmul.f32 %v28, 0.5
  %v30 = vld [vmem:[%s4] sm:$0xff]
  %v31 = vmul.f32 %v25, %v30
  %v32 = vsub.f32 %v29, %v31
  %v33 = vlaneseq
  %v34 = vand.u32 %v33, 127
  %v35 = vcvt.s32.f32 %v34
  %v36 = vxor.u32 %v34, 2
  %v37 = vcvt.s32.f32 %v36
  %38 = vrot.lane.b32.xlu0 %v35, 2
  %v39 = vpop.permute.xlu0 %38
  %vm40 = vcmp.eq.f32.partialorder %v39, %v37
  %41 = vrot.lane.b32.xlu0 %v27, 2
  %v42 = vpop.permute.xlu0 %41
  %43 = vrot.lane.b32.xlu0 %v27, 126
  %v44 = vpop.permute.xlu0 %43
  %v45 = vsel %vm40, %v42, %v44
  %v46 = vadd.f32 %v45, %v32
  %47 = vst [vmem:[%s5] sm:$0xff] %v46
  // Predicated region
  $region22: #{xt_layer_batched.1} parent=0 // pred_check
    _
  $region23: #{xt_layer_batched.1} parent=0 // pred_check_branch
    %49 = sbr.rel (0) target = $region25
  $region24: #{xt_layer_batched.1} parent=0 // pred_region
    _
  $region25: #{xt_layer_batched.1} parent=0 // pred_fallthru
    _
  // Predicated region
  $region26: #{xt_layer_batched.1} parent=0 // pred_check
    _
  $region27: #{xt_layer_batched.1} parent=0 // pred_check_branch
    %51 = sbr.rel (0) target = $region29
  $region28: #{xt_layer_batched.1} parent=0 // pred_region
    _
  $region29: #{xt_layer_batched.1} parent=0 // pred_fallthru
    _

</llo_original>
